<compile_context>
chip_gen: v6e
topology: v6e:2x2x1
jax: 0.10.0
libtpu: 0.0.40
codegen_flags: <defaults>
</compile_context>

<pallas_src>
import math
from functools import partial

import jax
import jax.numpy as jnp
from jax import lax
from jax.experimental import pallas as pl
from jax.experimental.pallas import tpu as pltpu


def _encoder_kernel(idx_ref, mask_ref, table_ref, pe_ref, out_ref, *,
                    seq_len, tile_t, unroll):
    # idx_ref / mask_ref : (B*T,) int32 in SMEM (scalar prefetch)
    # table_ref          : (num_codes, D) f32, VMEM-resident (constant index map)
    # pe_ref             : (TILE_T, D) f32 (block reused across the inner batch axis)
    # out_ref            : (TILE_T, D) f32
    tj = pl.program_id(0)
    b = pl.program_id(1)
    base = b * seq_len + tj * tile_t

    def row_body(i, carry):
        tok = idx_ref[base + i]                           # sreg read from SMEM
        keep = mask_ref[base + i] == 0
        # Dynamic single-row load; valid token ids are a precondition (PyTorch nn.Embedding
        # would raise on OOB ids, so we do not silently clip).
        row = table_ref[pl.ds(tok, 1), :]                 # (1, D)
        val = row + pe_ref[pl.ds(i, 1), :]                # PE add; dropout = identity (eval)
        out_ref[pl.ds(i, 1), :] = jnp.where(keep, val, jnp.zeros_like(val))
        return carry

    lax.fori_loop(0, tile_t, row_body, 0, unroll=unroll)


def _vmem_budget_bytes():
    """Per-generation (block-planning budget, compiler vmem limit)."""
    try:
        cap = pltpu.get_tpu_info().vmem_capacity_bytes
    except Exception:
        cap = 64 * 1024 * 1024                            # conservative: v7x per-TC physical
    return (cap * 5) // 8, (cap * 3) // 4


def _pick_tile_t(T, D, num_codes, budget_bytes):
    """Largest multiple-of-8 divisor of T (or full T) fitting the VMEM budget."""
    resident = 2 * num_codes * D * 4                      # table, 2 pipeline buffers
    per_row = 2 * (D * 4) + 2 * (D * 4)                   # pe + out tiles, f32, double-buffered
    avail = budget_bytes - resident
    if avail < 8 * per_row:
        # TODO(synk): for vocabularies too large to keep resident, switch to a manual
        # DMA row gather (memory_space=pl.ANY + make_async_copy); not needed at demo scale.
        raise ValueError(
            f"embedding table ({resident} B double-buffered) does not leave room for "
            f"8-row tiles within the VMEM budget ({budget_bytes} B)")
    max_rows = avail // per_row
    if T <= max_rows:
        return T                                          # full extent is always a legal block dim
    t = (min(max_rows, T) // 8) * 8
    while t >= 8 and T % t != 0:
        t -= 8
    return t if t >= 8 else T


def encoder_forward(x_idx, mask, table, pe):
    """x_idx: (B, T) int32 token ids; mask: (B, T) int32 (1 = pad); table: (C, D); pe: (L, D)."""
    B, T = x_idx.shape
    num_codes, D = table.shape
    if D % 128 != 0:
        raise ValueError(f"embedding_dim must be a multiple of 128 for lane-dense stores, got {D}")
    pe_t = pe[:T, :]                                      # pe[:, :x.size(1), :]

    budget, vmem_limit = _vmem_budget_bytes()
    tile_t = _pick_tile_t(T, D, num_codes, budget)
    n_t_tiles = pl.cdiv(T, tile_t)

    # Control data lives in SMEM via scalar prefetch; flattened 1-D to avoid 2-D SMEM padding.
    idx_flat = x_idx.reshape(-1).astype(jnp.int32)
    mask_flat = mask.reshape(-1).astype(jnp.int32)

    kernel = partial(_encoder_kernel, seq_len=T, tile_t=tile_t,
                     unroll=int(min(tile_t, 8)))

    grid_spec = pltpu.PrefetchScalarGridSpec(
        num_scalar_prefetch=2,
        grid=(n_t_tiles, B),                              # batch innermost -> PE block reused
        in_specs=[
            pl.BlockSpec((num_codes, D), lambda tj, b, idx, msk: (0, 0)),   # table: resident
            pl.BlockSpec((tile_t, D), lambda tj, b, idx, msk: (tj, 0)),     # positional encoding
        ],
        out_specs=pl.BlockSpec((None, tile_t, D), lambda tj, b, idx, msk: (b, tj, 0)),
    )

    return pl.pallas_call(
        kernel,
        out_shape=jax.ShapeDtypeStruct((B, T, D), table.dtype),
        grid_spec=grid_spec,
        compiler_params=pltpu.CompilerParams(
            dimension_semantics=("parallel", "parallel"),
            vmem_limit_bytes=int(vmem_limit),
        ),
    )(idx_flat, mask_flat, table, pe_t)


def make_positional_encoding(d_model, max_len=5000):
    position = jnp.arange(0, max_len, dtype=jnp.float32)[:, None]            # (L, 1)
    div_term = jnp.exp(jnp.arange(0, d_model, 2, dtype=jnp.float32)
                       * (-math.log(10000.0) / d_model))                     # (D/2,)
    pe = jnp.zeros((max_len, d_model), dtype=jnp.float32)
    pe = pe.at[:, 0::2].set(jnp.sin(position * div_term))
    pe = pe.at[:, 1::2].set(jnp.cos(position * div_term))
    return pe


if __name__ == "__main__":
    # Small, deterministic config (D chosen lane-dense: multiple of 128).
    B, T = 2, 8
    num_codes, embedding_dim = 32, 128

    key = jax.random.PRNGKey(0)
    k_emb, k_idx, k_mask = jax.random.split(key, 3)

    # Deterministic parameter init (nn.Embedding default ~ N(0, 1)).
    table = jax.random.normal(k_emb, (num_codes, embedding_dim), dtype=jnp.float32)
    pe = make_positional_encoding(embedding_dim, max_len=64)

    # Inputs: token ids and a boolean padding mask (passed as int32).
    x_idx = jax.random.randint(k_idx, (B, T), 0, num_codes, dtype=jnp.int32)
    mask = (jax.random.uniform(k_mask, (B, T)) > 0.7).astype(jnp.int32)

    out = encoder_forward(x_idx, mask, table, pe)
    out = jax.block_until_ready(out)

    # Pure-JAX reference check.
    ref = table[x_idx] + pe[None, :T, :]
    ref = jnp.where(mask[:, :, None] != 0, 0.0, ref)
    assert jnp.allclose(out, ref, atol=1e-5), "mismatch vs reference"

    print("KERNEL_OK")
</pallas_src>

<mosaic_0001>
module attributes {stable_mosaic.version = 11 : i64} {
  func.func @_encoder_kernel(%arg0: i32, %arg1: i32, %arg2: memref<16xi32, #tpu.memory_space<smem>>, %arg3: memref<16xi32, #tpu.memory_space<smem>>, %arg4: memref<32x128xf32, #tpu.memory_space<vmem>>, %arg5: memref<8x128xf32, #tpu.memory_space<vmem>>, %arg6: memref<1x8x128xf32, #tpu.memory_space<vmem>>) attributes {dimension_semantics = [#tpu.dimension_semantics<parallel>, #tpu.dimension_semantics<parallel>], iteration_bounds = array<i64: 1, 2>, scalar_prefetch = 2 : i64, scratch_operands = 0 : i64, tpu.core_type = #tpu.core_type<tc>, window_params = [{pipeline_mode = #tpu.pipeline_mode<synchronous>, transform_indices = @transform_0, window_bounds = array<i64: 32, 128>}, {transform_indices = @transform_1, window_bounds = array<i64: 8, 128>}, {transform_indices = @transform_2, window_bounds = array<i64: 1, 8, 128>}]} {
    %c8_i32 = arith.constant 8 : i32
    %0 = arith.muli %arg1, %c8_i32 : i32
    %c8_i32_0 = arith.constant 8 : i32
    %1 = arith.muli %arg0, %c8_i32_0 : i32
    %2 = arith.addi %0, %1 : i32
    %c0_i32 = arith.constant 0 : i32
    %3 = arith.addi %2, %c0_i32 : i32
    %4 = arith.index_cast %3 : i32 to index
    %5 = memref.load %arg2[%4] : memref<16xi32, #tpu.memory_space<smem>>
    %6 = arith.addi %2, %c0_i32 : i32
    %7 = arith.index_cast %6 : i32 to index
    %8 = memref.load %arg3[%7] : memref<16xi32, #tpu.memory_space<smem>>
    %c0_i32_1 = arith.constant 0 : i32
    %9 = arith.cmpi eq, %8, %c0_i32_1 : i32
    %10 = arith.index_cast %5 : i32 to index
    %c0 = arith.constant 0 : index
    %11 = vector.load %arg4[%10, %c0] : memref<32x128xf32, #tpu.memory_space<vmem>>, vector<1x128xf32>
    %12 = arith.index_cast %c0_i32 : i32 to index
    %c0_2 = arith.constant 0 : index
    %13 = vector.load %arg5[%12, %c0_2] : memref<8x128xf32, #tpu.memory_space<vmem>>, vector<1x128xf32>
    %14 = arith.addf %11, %13 : vector<1x128xf32>
    %cst = arith.constant 0.000000e+00 : f32
    %15 = vector.broadcast %cst : f32 to vector<1x128xf32>
    %16 = arith.select %9, %14, %15 : vector<1x128xf32>
    %c0_3 = arith.constant 0 : index
    %17 = arith.index_cast %c0_i32 : i32 to index
    %c0_4 = arith.constant 0 : index
    %18 = vector.load %arg6[%c0_3, %17, %c0_4] : memref<1x8x128xf32, #tpu.memory_space<vmem>>, vector<1x1x128xf32>
    %19 = vector.shape_cast %18 : vector<1x1x128xf32> to vector<1x128xf32>
    %20 = vector.shape_cast %16 : vector<1x128xf32> to vector<1x1x128xf32>
    tpu.vector_store %arg6[%c0_3, %17, %c0_4], %20 {strides = array<i32>} : memref<1x8x128xf32, #tpu.memory_space<vmem>>, vector<1x1x128xf32>,
    %c1_i32 = arith.constant 1 : i32
    %21 = arith.addi %2, %c1_i32 : i32
    %22 = arith.index_cast %21 : i32 to index
    %23 = memref.load %arg2[%22] : memref<16xi32, #tpu.memory_space<smem>>
    %24 = arith.addi %2, %c1_i32 : i32
    %25 = arith.index_cast %24 : i32 to index
    %26 = memref.load %arg3[%25] : memref<16xi32, #tpu.memory_space<smem>>
    %c0_i32_5 = arith.constant 0 : i32
    %27 = arith.cmpi eq, %26, %c0_i32_5 : i32
    %28 = arith.index_cast %23 : i32 to index
    %c0_6 = arith.constant 0 : index
    %29 = vector.load %arg4[%28, %c0_6] : memref<32x128xf32, #tpu.memory_space<vmem>>, vector<1x128xf32>
    %30 = arith.index_cast %c1_i32 : i32 to index
    %c0_7 = arith.constant 0 : index
    %31 = vector.load %arg5[%30, %c0_7] : memref<8x128xf32, #tpu.memory_space<vmem>>, vector<1x128xf32>
    %32 = arith.addf %29, %31 : vector<1x128xf32>
    %cst_8 = arith.constant 0.000000e+00 : f32
    %33 = vector.broadcast %cst_8 : f32 to vector<1x128xf32>
    %34 = arith.select %27, %32, %33 : vector<1x128xf32>
    %c0_9 = arith.constant 0 : index
    %35 = arith.index_cast %c1_i32 : i32 to index
    %c0_10 = arith.constant 0 : index
    %36 = vector.load %arg6[%c0_9, %35, %c0_10] : memref<1x8x128xf32, #tpu.memory_space<vmem>>, vector<1x1x128xf32>
    %37 = vector.shape_cast %36 : vector<1x1x128xf32> to vector<1x128xf32>
    %38 = vector.shape_cast %34 : vector<1x128xf32> to vector<1x1x128xf32>
    tpu.vector_store %arg6[%c0_9, %35, %c0_10], %38 {strides = array<i32>} : memref<1x8x128xf32, #tpu.memory_space<vmem>>, vector<1x1x128xf32>,
    %c2_i32 = arith.constant 2 : i32
    %39 = arith.addi %2, %c2_i32 : i32
    %40 = arith.index_cast %39 : i32 to index
    %41 = memref.load %arg2[%40] : memref<16xi32, #tpu.memory_space<smem>>
    %42 = arith.addi %2, %c2_i32 : i32
    %43 = arith.index_cast %42 : i32 to index
    %44 = memref.load %arg3[%43] : memref<16xi32, #tpu.memory_space<smem>>
    %c0_i32_11 = arith.constant 0 : i32
    %45 = arith.cmpi eq, %44, %c0_i32_11 : i32
    %46 = arith.index_cast %41 : i32 to index
    %c0_12 = arith.constant 0 : index
    %47 = vector.load %arg4[%46, %c0_12] : memref<32x128xf32, #tpu.memory_space<vmem>>, vector<1x128xf32>
    %48 = arith.index_cast %c2_i32 : i32 to index
    %c0_13 = arith.constant 0 : index
    %49 = vector.load %arg5[%48, %c0_13] : memref<8x128xf32, #tpu.memory_space<vmem>>, vector<1x128xf32>
    %50 = arith.addf %47, %49 : vector<1x128xf32>
    %cst_14 = arith.constant 0.000000e+00 : f32
    %51 = vector.broadcast %cst_14 : f32 to vector<1x128xf32>
    %52 = arith.select %45, %50, %51 : vector<1x128xf32>
    %c0_15 = arith.constant 0 : index
    %53 = arith.index_cast %c2_i32 : i32 to index
    %c0_16 = arith.constant 0 : index
    %54 = vector.load %arg6[%c0_15, %53, %c0_16] : memref<1x8x128xf32, #tpu.memory_space<vmem>>, vector<1x1x128xf32>
    %55 = vector.shape_cast %54 : vector<1x1x128xf32> to vector<1x128xf32>
    %56 = vector.shape_cast %52 : vector<1x128xf32> to vector<1x1x128xf32>
    tpu.vector_store %arg6[%c0_15, %53, %c0_16], %56 {strides = array<i32>} : memref<1x8x128xf32, #tpu.memory_space<vmem>>, vector<1x1x128xf32>,
    %c3_i32 = arith.constant 3 : i32
    %57 = arith.addi %2, %c3_i32 : i32
    %58 = arith.index_cast %57 : i32 to index
    %59 = memref.load %arg2[%58] : memref<16xi32, #tpu.memory_space<smem>>
    %60 = arith.addi %2, %c3_i32 : i32
    %61 = arith.index_cast %60 : i32 to index
    %62 = memref.load %arg3[%61] : memref<16xi32, #tpu.memory_space<smem>>
    %c0_i32_17 = arith.constant 0 : i32
    %63 = arith.cmpi eq, %62, %c0_i32_17 : i32
    %64 = arith.index_cast %59 : i32 to index
    %c0_18 = arith.constant 0 : index
    %65 = vector.load %arg4[%64, %c0_18] : memref<32x128xf32, #tpu.memory_space<vmem>>, vector<1x128xf32>
    %66 = arith.index_cast %c3_i32 : i32 to index
    %c0_19 = arith.constant 0 : index
    %67 = vector.load %arg5[%66, %c0_19] : memref<8x128xf32, #tpu.memory_space<vmem>>, vector<1x128xf32>
    %68 = arith.addf %65, %67 : vector<1x128xf32>
    %cst_20 = arith.constant 0.000000e+00 : f32
    %69 = vector.broadcast %cst_20 : f32 to vector<1x128xf32>
    %70 = arith.select %63, %68, %69 : vector<1x128xf32>
    %c0_21 = arith.constant 0 : index
    %71 = arith.index_cast %c3_i32 : i32 to index
    %c0_22 = arith.constant 0 : index
    %72 = vector.load %arg6[%c0_21, %71, %c0_22] : memref<1x8x128xf32, #tpu.memory_space<vmem>>, vector<1x1x128xf32>
    %73 = vector.shape_cast %72 : vector<1x1x128xf32> to vector<1x128xf32>
    %74 = vector.shape_cast %70 : vector<1x128xf32> to vector<1x1x128xf32>
    tpu.vector_store %arg6[%c0_21, %71, %c0_22], %74 {strides = array<i32>} : memref<1x8x128xf32, #tpu.memory_space<vmem>>, vector<1x1x128xf32>,
    %c4_i32 = arith.constant 4 : i32
    %75 = arith.addi %2, %c4_i32 : i32
    %76 = arith.index_cast %75 : i32 to index
    %77 = memref.load %arg2[%76] : memref<16xi32, #tpu.memory_space<smem>>
    %78 = arith.addi %2, %c4_i32 : i32
    %79 = arith.index_cast %78 : i32 to index
    %80 = memref.load %arg3[%79] : memref<16xi32, #tpu.memory_space<smem>>
    %c0_i32_23 = arith.constant 0 : i32
    %81 = arith.cmpi eq, %80, %c0_i32_23 : i32
    %82 = arith.index_cast %77 : i32 to index
    %c0_24 = arith.constant 0 : index
    %83 = vector.load %arg4[%82, %c0_24] : memref<32x128xf32, #tpu.memory_space<vmem>>, vector<1x128xf32>
    %84 = arith.index_cast %c4_i32 : i32 to index
    %c0_25 = arith.constant 0 : index
    %85 = vector.load %arg5[%84, %c0_25] : memref<8x128xf32, #tpu.memory_space<vmem>>, vector<1x128xf32>
    %86 = arith.addf %83, %85 : vector<1x128xf32>
    %cst_26 = arith.constant 0.000000e+00 : f32
    %87 = vector.broadcast %cst_26 : f32 to vector<1x128xf32>
    %88 = arith.select %81, %86, %87 : vector<1x128xf32>
    %c0_27 = arith.constant 0 : index
    %89 = arith.index_cast %c4_i32 : i32 to index
    %c0_28 = arith.constant 0 : index
    %90 = vector.load %arg6[%c0_27, %89, %c0_28] : memref<1x8x128xf32, #tpu.memory_space<vmem>>, vector<1x1x128xf32>
    %91 = vector.shape_cast %90 : vector<1x1x128xf32> to vector<1x128xf32>
    %92 = vector.shape_cast %88 : vector<1x128xf32> to vector<1x1x128xf32>
    tpu.vector_store %arg6[%c0_27, %89, %c0_28], %92 {strides = array<i32>} : memref<1x8x128xf32, #tpu.memory_space<vmem>>, vector<1x1x128xf32>,
    %c5_i32 = arith.constant 5 : i32
    %93 = arith.addi %2, %c5_i32 : i32
    %94 = arith.index_cast %93 : i32 to index
    %95 = memref.load %arg2[%94] : memref<16xi32, #tpu.memory_space<smem>>
    %96 = arith.addi %2, %c5_i32 : i32
    %97 = arith.index_cast %96 : i32 to index
    %98 = memref.load %arg3[%97] : memref<16xi32, #tpu.memory_space<smem>>
    %c0_i32_29 = arith.constant 0 : i32
    %99 = arith.cmpi eq, %98, %c0_i32_29 : i32
    %100 = arith.index_cast %95 : i32 to index
    %c0_30 = arith.constant 0 : index
    %101 = vector.load %arg4[%100, %c0_30] : memref<32x128xf32, #tpu.memory_space<vmem>>, vector<1x128xf32>
    %102 = arith.index_cast %c5_i32 : i32 to index
    %c0_31 = arith.constant 0 : index
    %103 = vector.load %arg5[%102, %c0_31] : memref<8x128xf32, #tpu.memory_space<vmem>>, vector<1x128xf32>
    %104 = arith.addf %101, %103 : vector<1x128xf32>
    %cst_32 = arith.constant 0.000000e+00 : f32
    %105 = vector.broadcast %cst_32 : f32 to vector<1x128xf32>
    %106 = arith.select %99, %104, %105 : vector<1x128xf32>
    %c0_33 = arith.constant 0 : index
    %107 = arith.index_cast %c5_i32 : i32 to index
    %c0_34 = arith.constant 0 : index
    %108 = vector.load %arg6[%c0_33, %107, %c0_34] : memref<1x8x128xf32, #tpu.memory_space<vmem>>, vector<1x1x128xf32>
    %109 = vector.shape_cast %108 : vector<1x1x128xf32> to vector<1x128xf32>
    %110 = vector.shape_cast %106 : vector<1x128xf32> to vector<1x1x128xf32>
    tpu.vector_store %arg6[%c0_33, %107, %c0_34], %110 {strides = array<i32>} : memref<1x8x128xf32, #tpu.memory_space<vmem>>, vector<1x1x128xf32>,
    %c6_i32 = arith.constant 6 : i32
    %111 = arith.addi %2, %c6_i32 : i32
    %112 = arith.index_cast %111 : i32 to index
    %113 = memref.load %arg2[%112] : memref<16xi32, #tpu.memory_space<smem>>
    %114 = arith.addi %2, %c6_i32 : i32
    %115 = arith.index_cast %114 : i32 to index
    %116 = memref.load %arg3[%115] : memref<16xi32, #tpu.memory_space<smem>>
    %c0_i32_35 = arith.constant 0 : i32
    %117 = arith.cmpi eq, %116, %c0_i32_35 : i32
    %118 = arith.index_cast %113 : i32 to index
    %c0_36 = arith.constant 0 : index
    %119 = vector.load %arg4[%118, %c0_36] : memref<32x128xf32, #tpu.memory_space<vmem>>, vector<1x128xf32>
    %120 = arith.index_cast %c6_i32 : i32 to index
    %c0_37 = arith.constant 0 : index
    %121 = vector.load %arg5[%120, %c0_37] : memref<8x128xf32, #tpu.memory_space<vmem>>, vector<1x128xf32>
    %122 = arith.addf %119, %121 : vector<1x128xf32>
    %cst_38 = arith.constant 0.000000e+00 : f32
    %123 = vector.broadcast %cst_38 : f32 to vector<1x128xf32>
    %124 = arith.select %117, %122, %123 : vector<1x128xf32>
    %c0_39 = arith.constant 0 : index
    %125 = arith.index_cast %c6_i32 : i32 to index
    %c0_40 = arith.constant 0 : index
    %126 = vector.load %arg6[%c0_39, %125, %c0_40] : memref<1x8x128xf32, #tpu.memory_space<vmem>>, vector<1x1x128xf32>
    %127 = vector.shape_cast %126 : vector<1x1x128xf32> to vector<1x128xf32>
    %128 = vector.shape_cast %124 : vector<1x128xf32> to vector<1x1x128xf32>
    tpu.vector_store %arg6[%c0_39, %125, %c0_40], %128 {strides = array<i32>} : memref<1x8x128xf32, #tpu.memory_space<vmem>>, vector<1x1x128xf32>,
    %c7_i32 = arith.constant 7 : i32
    %129 = arith.addi %2, %c7_i32 : i32
    %130 = arith.index_cast %129 : i32 to index
    %131 = memref.load %arg2[%130] : memref<16xi32, #tpu.memory_space<smem>>
    %132 = arith.addi %2, %c7_i32 : i32
    %133 = arith.index_cast %132 : i32 to index
    %134 = memref.load %arg3[%133] : memref<16xi32, #tpu.memory_space<smem>>
    %c0_i32_41 = arith.constant 0 : i32
    %135 = arith.cmpi eq, %134, %c0_i32_41 : i32
    %136 = arith.index_cast %131 : i32 to index
    %c0_42 = arith.constant 0 : index
    %137 = vector.load %arg4[%136, %c0_42] : memref<32x128xf32, #tpu.memory_space<vmem>>, vector<1x128xf32>
    %138 = arith.index_cast %c7_i32 : i32 to index
    %c0_43 = arith.constant 0 : index
    %139 = vector.load %arg5[%138, %c0_43] : memref<8x128xf32, #tpu.memory_space<vmem>>, vector<1x128xf32>
    %140 = arith.addf %137, %139 : vector<1x128xf32>
    %cst_44 = arith.constant 0.000000e+00 : f32
    %141 = vector.broadcast %cst_44 : f32 to vector<1x128xf32>
    %142 = arith.select %135, %140, %141 : vector<1x128xf32>
    %c0_45 = arith.constant 0 : index
    %143 = arith.index_cast %c7_i32 : i32 to index
    %c0_46 = arith.constant 0 : index
    %144 = vector.load %arg6[%c0_45, %143, %c0_46] : memref<1x8x128xf32, #tpu.memory_space<vmem>>, vector<1x1x128xf32>
    %145 = vector.shape_cast %144 : vector<1x1x128xf32> to vector<1x128xf32>
    %146 = vector.shape_cast %142 : vector<1x128xf32> to vector<1x1x128xf32>
    tpu.vector_store %arg6[%c0_45, %143, %c0_46], %146 {strides = array<i32>} : memref<1x8x128xf32, #tpu.memory_space<vmem>>, vector<1x1x128xf32>,
    %c8_i32_47 = arith.constant 8 : i32
    return
  }
  func.func @transform_0(%arg0: i32, %arg1: i32, %arg2: memref<16xi32, #tpu.memory_space<smem>>, %arg3: memref<16xi32, #tpu.memory_space<smem>>) -> (i32, i32) {
    %c0_i32 = arith.constant 0 : i32
    %c0_i32_0 = arith.constant 0 : i32
    %c0_i32_1 = arith.constant 0 : i32
    return %c0_i32, %c0_i32_0 : i32, i32
  }
  func.func @transform_1(%arg0: i32, %arg1: i32, %arg2: memref<16xi32, #tpu.memory_space<smem>>, %arg3: memref<16xi32, #tpu.memory_space<smem>>) -> (i32, i32) {
    %c0_i32 = arith.constant 0 : i32
    %c0_i32_0 = arith.constant 0 : i32
    return %arg0, %c0_i32 : i32, i32
  }
  func.func @transform_2(%arg0: i32, %arg1: i32, %arg2: memref<16xi32, #tpu.memory_space<smem>>, %arg3: memref<16xi32, #tpu.memory_space<smem>>) -> (i32, i32, i32) {
    %c0_i32 = arith.constant 0 : i32
    %c0_i32_0 = arith.constant 0 : i32
    return %arg1, %arg0, %c0_i32 : i32, i32, i32
  }
}

</mosaic_0001>

<llo_original>
// kernel: tpu_custom_call.1
$region0: #{tpu_custom_call.1}
  #allocation0 [shape = 'u32[]', space=smem, size = 0x4, offset = 0x4, fixed_abs, tag = 'smem constant byte address 0x4 - core index']
  #allocation1 [shape = 'u32[144,128]{1,0:T(1,128)}', space=vmem, size = 0x12000, scoped, tag = 'internal scratch']
  #allocation2 [shape = 's32[1]{0}', space=sflag, size = 0x4, scoped, tag = 'scoped memory for tpu_custom_call.1']
  #allocation3 [shape = 'u8[512]{0}', space=smem, size = 0x200, scoped, tag = 'prefetched SMEM operand 0']
  #allocation4 [shape = 'u8[512]{0}', space=smem, size = 0x200, scoped, tag = 'prefetched SMEM operand 1']
  %s0 = inlined_call_operand.hbm [shape: s32[16], index: 0, kind: input, shape index: {}]
  %s1 = inlined_call_operand.vmem [shape: s32[16], index: 1, kind: input, shape index: {}]
  %s2 = inlined_call_operand.hbm [shape: f32[32,128], index: 2, kind: input, shape index: {}]
  %s3 = inlined_call_operand.hbm [shape: f32[8,128], index: 3, kind: input, shape index: {}]
  %s4 = inlined_call_operand.hbm [shape: f32[2,8,128], index: 4, kind: output, shape index: {}]
  %s5 = sld [smem:[#allocation0]]
  $region49: #{tpu_custom_call.1} parent=0
    _
  %s7 = ssub.s32 1, %s5
  %s8 = scalar_select 0, %s7, %s5
  %10 = dma.hbm_to_smem %s0, 16, [#allocation3], [#allocation2]
  %s11 = sshll.u32 %s1, 4
  %s12 = int_to_ptr.vmem [resolvable:$true] %s11
  %14 = dma.vmem_to_smem %s12, 16, [#allocation4], [#allocation2]
  %15 = dma.done [#allocation2], 32
  %16 = sfence
  $region1: #{tpu_custom_call.1} parent=0
    #allocation5 [shape = 'u8[16384]{0}', space=vmem, size = 0x4000, scoped, tag = 'input window, operand 2, single buffered']
    #allocation6 [shape = 's32[2]{0}', space=sflag, size = 0x8, scoped, tag = 'scoped memory for tpu_custom_call.1']
    #allocation7 [shape = 's32[2]{0}', space=sflag, size = 0x8, scoped, tag = 'scoped memory for tpu_custom_call.1']
    #allocation8 [shape = 'u8[4096]{0}', space=vmem, size = 0x1000, scoped, tag = 'input window, operand 3, single buffered']
    #allocation9 [shape = 's32[1]{0}', space=sflag, size = 0x4, scoped, tag = 'scoped memory for tpu_custom_call.1']
    #allocation10 [shape = 'u8[8192]{0}', space=vmem, size = 0x2000, scoped, tag = 'output window, operand 0']
    %17 = vsyncpa [#allocation6], 0
    %18 = vsyncpa [#allocation9], 0
    %19 = vsyncpa [#allocation7], 0
    %s20 = scalar_lea.sflag [#allocation7], 1
    %21 = vsyncpa %s20, 0
    loop: start=0, step=1, limit=4
    $region2: #{tpu_custom_call.1} parent=1 // loop_pre_header
      _
    $region3: #{tpu_custom_call.1} parent=1 // loop_header
      %s23 = sphi 0, %s27
      %p24 = scmp.ge.s32.totalorder %s23, 4
      %s30 = sphi 0, %s42
      %s31 = sphi 0, %s38
      %s32 = sphi 0, %s30
      %s33 = sphi 0, %s31
      %s34 = sphi 0, %s32
      %s35 = sphi 0, %s33
      %s43 = sphi 0, %s43
      %s45 = sphi 0, %s43
      %s46 = sphi 0, %s45
      %s60 = sphi 0, %s46
      %s66 = sphi 0, %s68
      %s69 = sphi 0, %s66
      %s70 = sphi 0, %s69
      %s86 = sphi 0, %s70
      %s94 = sphi 0, %s96
      %s97 = sphi 0, %s94
      %s98 = sphi 0, %s97
      %s114 = sphi 0, %s98
    $region4: #{tpu_custom_call.1} parent=1 // loop_header_branch
      %26 = sbr.rel (%p24) target = $region8
    $region5: #{tpu_custom_call.1} parent=1 // loop_body
      %s28 = ssub.s32 %s23, 1
      %s29 = ssub.s32 %s23, 2
      %s36 = sadd.s32 1, %s31
      %p37 = scmp.ge.s32.totalorder %s36, 2
      %s38 = scalar_select %p37, 0, %s36
      %s39 = sadd.s32 1, %s30
      %s40 = scalar_select %p37, %s39, %s30
      %p41 = scmp.ge.s32.totalorder %s40, 1
      %s42 = scalar_select %p41, 0, %s40
      %s44 = sadd.s32 %s43, 1
      %p47 = scmp.eq.s32.totalorder %s23, 1
      %p48 = scmp.ne.s32.totalorder %s43, %s45
      %p49 = scmp.eq.s32.totalorder %s23, 0
      %p50 = por %p48, %p49
      %p51 = scmp.ne.s32.totalorder %s43, %s45
      %p52 = scmp.eq.s32.totalorder %s28, 1
      %p53 = por %p51, %p52
      %p54 = scmp.ne.s32.totalorder %s45, %s46
      %p55 = scmp.eq.s32.totalorder %s28, 0
      %p56 = por %p54, %p55
      %p57 = scmp.ne.s32.totalorder %s45, %s46
      %p58 = scmp.eq.s32.totalorder %s29, 1
      %p59 = por %p57, %p58
      %p61 = scmp.ne.s32.totalorder %s46, %s60
      %p62 = scmp.eq.s32.totalorder %s29, 0
      %p63 = por %p61, %p62
      %s64 = ssub.s32 %s30, %s42
      %p65 = scmp.eq.s32.totalorder %s64, 0
      %s67 = sadd.s32 %s66, 1
      %s68 = scalar_select %p65, %s66, %s67
      %p71 = pneg %p65
      %p72 = scmp.eq.s32.totalorder %s23, 1
      %p73 = por %p71, %p72
      %p74 = scmp.ne.s32.totalorder %s66, %s69
      %p75 = scmp.eq.s32.totalorder %s23, 0
      %p76 = por %p74, %p75
      %p77 = scmp.ne.s32.totalorder %s66, %s69
      %p78 = scmp.eq.s32.totalorder %s28, 1
      %p79 = por %p77, %p78
      %p80 = scmp.ne.s32.totalorder %s69, %s70
      %p81 = scmp.eq.s32.totalorder %s28, 0
      %p82 = por %p80, %p81
      %p83 = scmp.ne.s32.totalorder %s69, %s70
      %p84 = scmp.eq.s32.totalorder %s29, 1
      %p85 = por %p83, %p84
      %p87 = scmp.ne.s32.totalorder %s70, %s86
      %p88 = scmp.eq.s32.totalorder %s29, 0
      %p89 = por %p87, %p88
      %s90 = ssub.s32 %s31, %s38
      %s91 = ssub.s32 %s30, %s42
      %s92 = sor.u32 %s90, %s91
      %p93 = scmp.eq.s32.totalorder %s92, 0
      %s95 = sadd.s32 %s94, 1
      %s96 = scalar_select %p93, %s94, %s95
      %p99 = pneg %p93
      %p100 = scmp.eq.s32.totalorder %s23, 1
      %p101 = por %p99, %p100
      %p102 = scmp.ne.s32.totalorder %s94, %s97
      %p103 = scmp.eq.s32.totalorder %s23, 0
      %p104 = por %p102, %p103
      %p105 = scmp.ne.s32.totalorder %s94, %s97
      %p106 = scmp.eq.s32.totalorder %s28, 1
      %p107 = por %p105, %p106
      %p108 = scmp.ne.s32.totalorder %s97, %s98
      %p109 = scmp.eq.s32.totalorder %s28, 0
      %p110 = por %p108, %p109
      %p111 = scmp.ne.s32.totalorder %s97, %s98
      %p112 = scmp.eq.s32.totalorder %s29, 1
      %p113 = por %p111, %p112
      %p115 = scmp.ne.s32.totalorder %s98, %s114
      %p116 = scmp.eq.s32.totalorder %s29, 0
      %p117 = por %p115, %p116
      %p118 = scmp.le.s32.totalorder 1, %s23
      %p119 = scmp.lt.s32.totalorder %s23, 3
      %p120 = pnand %p118, %p119
      %p121 = pneg %p120
      // Predicated region
      $region9: #{tpu_custom_call.1} parent=5 // pred_check
        _
      $region10: #{tpu_custom_call.1} parent=5 // pred_check_branch
        %123 = sbr.rel (%p120) target = $region12
      $region11: #{tpu_custom_call.1} parent=5 // pred_region
        %s124 = ssub.s32 %s23, 1
        // Predicated region
        $region13: #{tpu_custom_call.1} parent=11 // pred_check
          %p125 = pneg %p56
        $region14: #{tpu_custom_call.1} parent=11 // pred_check_branch
          %127 = sbr.rel (%p125) target = $region16
        $region15: #{tpu_custom_call.1} parent=11 // pred_region
          %s129 = ssub.s32 512, 512
          %130 = vsyncadd [#allocation6], %s129
          %s131 = sshll.u32 [#allocation5], 4
          %s132 = int_to_ptr.vmem [resolvable:$true] %s131
          %137 = dma.hbm_to_vmem [thread:$0]  %s2, 512, %s132, [#allocation6], 128, 128, 8
        $region16: #{tpu_custom_call.1} parent=11 // pred_fallthru
          _
        // Predicated region
        $region17: #{tpu_custom_call.1} parent=11 // pred_check
          %p138 = pneg %p82
        $region18: #{tpu_custom_call.1} parent=11 // pred_check_branch
          %140 = sbr.rel (%p138) target = $region20
        $region19: #{tpu_custom_call.1} parent=11 // pred_region
          %s142 = ssub.s32 128, 128
          %143 = vsyncadd [#allocation9], %s142
          %s144 = smul.addr %s32, 128
          %s145 = scalar_lea.hbm %s3, %s144
          %s147 = sshll.u32 [#allocation8], 4
          %s148 = int_to_ptr.vmem [resolvable:$true] %s147
          %150 = dma.hbm_to_vmem [thread:$0]  %s145, 128, %s148, [#allocation9]
        $region20: #{tpu_custom_call.1} parent=11 // pred_fallthru
          _
      $region12: #{tpu_custom_call.1} parent=5 // pred_fallthru
        _
      %p151 = scmp.lt.s32.totalorder %s23, 2
      // Predicated region
      $region21: #{tpu_custom_call.1} parent=5 // pred_check
        %p152 = pneg %p151
      $region22: #{tpu_custom_call.1} parent=5 // pred_check_branch
        %154 = sbr.rel (%p152) target = $region24
      $region23: #{tpu_custom_call.1} parent=5 // pred_region
        _
      $region24: #{tpu_custom_call.1} parent=5 // pred_fallthru
        _
      %p155 = scmp.le.s32.totalorder 1, %s23
      %p156 = scmp.lt.s32.totalorder %s23, 3
      %p157 = pnand %p155, %p156
      %p158 = pneg %p157
      // Predicated region
      $region25: #{tpu_custom_call.1} parent=5 // pred_check
        _
      $region26: #{tpu_custom_call.1} parent=5 // pred_check_branch
        %160 = sbr.rel (%p157) target = $region28
      $region27: #{tpu_custom_call.1} parent=5 // pred_region
        %s161 = ssub.s32 %s23, 1
        // Predicated region
        $region29: #{tpu_custom_call.1} parent=27 // pred_check
          %p162 = pneg %p56
        $region30: #{tpu_custom_call.1} parent=27 // pred_check_branch
          %164 = sbr.rel (%p162) target = $region32
        $region31: #{tpu_custom_call.1} parent=27 // pred_region
          %165 = dma.done [#allocation6], 512
        $region32: #{tpu_custom_call.1} parent=27 // pred_fallthru
          _
        // Predicated region
        $region33: #{tpu_custom_call.1} parent=27 // pred_check
          %p166 = pneg %p82
        $region34: #{tpu_custom_call.1} parent=27 // pred_check_branch
          %168 = sbr.rel (%p166) target = $region36
        $region35: #{tpu_custom_call.1} parent=27 // pred_region
          %169 = dma.done [#allocation9], 128
        $region36: #{tpu_custom_call.1} parent=27 // pred_fallthru
          _
        %p170 = pneg %p56
        %p171 = pneg %p53
        %p172 = pneg %p82
        %p173 = pneg %p79
        %p174 = pneg %p110
        %p175 = pneg %p107
        %s176 = sand.u32 %s97, 1
        %s177 = scalar_lea.sflag [#allocation7], %s176
        %s178 = sand.u32 %s97, 1
        %s179 = smul.addr %s178, 8
        %s180 = scalar_lea.vmem [#allocation10], %s179
        %s181 = smul.u32 %s33, 8
        %s182 = smul.u32 %s32, 8
        %s183 = sadd.s32 %s181, %s182
        %s184 = sld [smem:[#allocation3 + %s183]]
        %s185 = sld [smem:[#allocation4 + %s183]]
        %p186 = scmp.eq.s32.totalorder %s185, 0
        %s187 = scalar_lea.vmem [#allocation5], %s184
        %v188 = vld [vmem:[%s187] sm:$0x1]
        %v189 = vld [vmem:[#allocation8] sm:$0x1]
        %v190 = vadd.f32 %v188, %v189
        %s191 = scalar_select %p186, 1, 0
        %v192 = vstv %s191
        %vm193 = vcmp.eq.s32.totalorder %v192, 1
        %v194 = vsel %vm193, %v190, 0.0
        %195 = vst [vmem:[%s180] sm:$0x1] %v194
        %s196 = sadd.s32 %s183, 1
        %s197 = sld [smem:[#allocation3 + %s196]]
        %s198 = sld [smem:[#allocation4 + %s196]]
        %p199 = scmp.eq.s32.totalorder %s198, 0
        %s200 = scalar_lea.vmem [#allocation5], %s197
        %v201 = vld [vmem:[%s200] sm:$0x1]
        %v202 = vld [vmem:[#allocation8 + $0x1] sm:$0x1]
        %v203 = vadd.f32 %v201, %v202
        %s204 = scalar_select %p199, 1, 0
        %v205 = vstv %s204
        %vm206 = vcmp.eq.s32.totalorder %v205, 1
        %v207 = vsel %vm206, %v203, 0.0
        %208 = vst [vmem:[%s180 + $0x1] sm:$0x1] %v207
        %s209 = sadd.s32 %s183, 2
        %s210 = sld [smem:[#allocation3 + %s209]]
        %s211 = sld [smem:[#allocation4 + %s209]]
        %p212 = scmp.eq.s32.totalorder %s211, 0
        %s213 = scalar_lea.vmem [#allocation5], %s210
        %v214 = vld [vmem:[%s213] sm:$0x1]
        %v215 = vld [vmem:[#allocation8 + $0x2] sm:$0x1]
        %v216 = vadd.f32 %v214, %v215
        %s217 = scalar_select %p212, 1, 0
        %v218 = vstv %s217
        %vm219 = vcmp.eq.s32.totalorder %v218, 1
        %v220 = vsel %vm219, %v216, 0.0
        %221 = vst [vmem:[%s180 + $0x2] sm:$0x1] %v220
        %s222 = sadd.s32 %s183, 3
        %s223 = sld [smem:[#allocation3 + %s222]]
        %s224 = sld [smem:[#allocation4 + %s222]]
        %p225 = scmp.eq.s32.totalorder %s224, 0
        %s226 = scalar_lea.vmem [#allocation5], %s223
        %v227 = vld [vmem:[%s226] sm:$0x1]
        %v228 = vld [vmem:[#allocation8 + $0x3] sm:$0x1]
        %v229 = vadd.f32 %v227, %v228
        %s230 = scalar_select %p225, 1, 0
        %v231 = vstv %s230
        %vm232 = vcmp.eq.s32.totalorder %v231, 1
        %v233 = vsel %vm232, %v229, 0.0
        %234 = vst [vmem:[%s180 + $0x3] sm:$0x1] %v233
        %s235 = sadd.s32 %s183, 4
        %s236 = sld [smem:[#allocation3 + %s235]]
        %s237 = sld [smem:[#allocation4 + %s235]]
        %p238 = scmp.eq.s32.totalorder %s237, 0
        %s239 = scalar_lea.vmem [#allocation5], %s236
        %v240 = vld [vmem:[%s239] sm:$0x1]
        %v241 = vld [vmem:[#allocation8 + $0x4] sm:$0x1]
        %v242 = vadd.f32 %v240, %v241
        %s243 = scalar_select %p238, 1, 0
        %v244 = vstv %s243
        %vm245 = vcmp.eq.s32.totalorder %v244, 1
        %v246 = vsel %vm245, %v242, 0.0
        %247 = vst [vmem:[%s180 + $0x4] sm:$0x1] %v246
        %s248 = sadd.s32 %s183, 5
        %s249 = sld [smem:[#allocation3 + %s248]]
        %s250 = sld [smem:[#allocation4 + %s248]]
        %p251 = scmp.eq.s32.totalorder %s250, 0
        %s252 = scalar_lea.vmem [#allocation5], %s249
        %v253 = vld [vmem:[%s252] sm:$0x1]
        %v254 = vld [vmem:[#allocation8 + $0x5] sm:$0x1]
        %v255 = vadd.f32 %v253, %v254
        %s256 = scalar_select %p251, 1, 0
        %v257 = vstv %s256
        %vm258 = vcmp.eq.s32.totalorder %v257, 1
        %v259 = vsel %vm258, %v255, 0.0
        %260 = vst [vmem:[%s180 + $0x5] sm:$0x1] %v259
        %s261 = sadd.s32 %s183, 6
        %s262 = sld [smem:[#allocation3 + %s261]]
        %s263 = sld [smem:[#allocation4 + %s261]]
        %p264 = scmp.eq.s32.totalorder %s263, 0
        %s265 = scalar_lea.vmem [#allocation5], %s262
        %v266 = vld [vmem:[%s265] sm:$0x1]
        %v267 = vld [vmem:[#allocation8 + $0x6] sm:$0x1]
        %v268 = vadd.f32 %v266, %v267
        %s269 = scalar_select %p264, 1, 0
        %v270 = vstv %s269
        %vm271 = vcmp.eq.s32.totalorder %v270, 1
        %v272 = vsel %vm271, %v268, 0.0
        %273 = vst [vmem:[%s180 + $0x6] sm:$0x1] %v272
        %s274 = sadd.s32 %s183, 7
        %s275 = sld [smem:[#allocation3 + %s274]]
        %s276 = sld [smem:[#allocation4 + %s274]]
        %p277 = scmp.eq.s32.totalorder %s276, 0
        %s278 = scalar_lea.vmem [#allocation5], %s275
        %v279 = vld [vmem:[%s278] sm:$0x1]
        %v280 = vld [vmem:[#allocation8 + $0x7] sm:$0x1]
        %v281 = vadd.f32 %v279, %v280
        %s282 = scalar_select %p277, 1, 0
        %v283 = vstv %s282
        %vm284 = vcmp.eq.s32.totalorder %v283, 1
        %v285 = vsel %vm284, %v281, 0.0
        %286 = vst [vmem:[%s180 + $0x7] sm:$0x1] %v285
        %s287 = sand.u32 %s97, 1
        %s288 = scalar_lea.sflag [#allocation7], %s287
        %s289 = sand.u32 %s97, 1
        %s290 = smul.addr %s289, 8
        %s291 = scalar_lea.vmem [#allocation10], %s290
        // Predicated region
        $region37: #{tpu_custom_call.1} parent=27 // pred_check
          %p292 = pneg %p107
        $region38: #{tpu_custom_call.1} parent=27 // pred_check_branch
          %294 = sbr.rel (%p292) target = $region40
        $region39: #{tpu_custom_call.1} parent=27 // pred_region
          %s296 = ssub.s32 128, 128
          %297 = vsyncadd %s288, %s296
          %s298 = sadd.s32 %s32, %s33
          %s299 = smul.addr %s298, 128
          %s300 = scalar_lea.hbm %s4, %s299
          %s302 = sshll.u32 %s291, 4
          %s303 = int_to_ptr.vmem [resolvable:$true] %s302
          %305 = dma.vmem_to_hbm [thread:$0]  %s303, 128, %s300, %s288
        $region40: #{tpu_custom_call.1} parent=27 // pred_fallthru
          _
      $region28: #{tpu_custom_call.1} parent=5 // pred_fallthru
        _
      %p306 = scmp.le.s32.totalorder 2, %s23
      // Predicated region
      $region41: #{tpu_custom_call.1} parent=5 // pred_check
        %p307 = pneg %p306
      $region42: #{tpu_custom_call.1} parent=5 // pred_check_branch
        %309 = sbr.rel (%p307) target = $region44
      $region43: #{tpu_custom_call.1} parent=5 // pred_region
        %s310 = ssub.s32 %s23, 2
        // Predicated region
        $region45: #{tpu_custom_call.1} parent=43 // pred_check
          %p311 = pneg %p113
        $region46: #{tpu_custom_call.1} parent=43 // pred_check_branch
          %313 = sbr.rel (%p311) target = $region48
        $region47: #{tpu_custom_call.1} parent=43 // pred_region
          %s314 = sand.u32 %s98, 1
          %s315 = scalar_lea.sflag [#allocation7], %s314
          %s316 = sand.u32 %s98, 1
          %s317 = smul.addr %s316, 8
          %s318 = scalar_lea.vmem [#allocation10], %s317
          %319 = dma.done %s315, 128
        $region48: #{tpu_custom_call.1} parent=43 // pred_fallthru
          _
      $region44: #{tpu_custom_call.1} parent=5 // pred_fallthru
        _
    $region6: #{tpu_custom_call.1} parent=1 // loop_footer
      %s27 = sadd.s32 1, %s23
    $region7: #{tpu_custom_call.1} parent=1 // loop_footer_branch
      %22 = sbr.rel target = $region3
    $region8: #{tpu_custom_call.1} parent=1 // loop_exit
      _
    %320 = vsyncpa [#allocation6], 1
    %s321 = scalar_lea.sflag [#allocation6], 1
    %322 = vsyncpa %s321, 1
    %323 = vsyncpa [#allocation9], 1
    %324 = vsyncpa [#allocation7], 1
    %s325 = scalar_lea.sflag [#allocation7], 1
    %326 = vsyncpa %s325, 1

</llo_original>
